<compile_context>
chip_gen: v6e
topology: v6e:2x2x1
jax: 0.10.0
libtpu: 0.0.40
codegen_flags: <defaults>
</compile_context>

<pallas_src>
import math

import jax
import jax.numpy as jnp
from jax.experimental import pallas as pl
from jax.experimental.pallas import tpu as pltpu


def _round_up(x: int, m: int) -> int:
    return (x + m - 1) // m * m


# ------------------------------ Pallas kernel --------------------------------
def _time_embed_kernel(t_ref, freq_ref, cmask_ref, w1_ref, b1_ref, w2_ref,
                       b2_ref, o_ref):
    # t_ref:    (TM, 1)   f32 timesteps (row tile)
    # freq_ref: (1, Dp)   [freqs, freqs, 0...]
    # cmask_ref:(1, Dp)   1.0 on cos columns, 0.0 on sin / pad columns
    # w1_ref:   (Dp, Hp)  b1_ref: (1, Hp)
    # w2_ref:   (Hp, Dp)  b2_ref: (1, Dp)
    # o_ref:    (TM, Dp)
    args = t_ref[...] * freq_ref[...]                              # (TM, Dp)
    emb = jnp.where(cmask_ref[...] > 0.5, jnp.cos(args), jnp.sin(args))
    h = jnp.dot(emb, w1_ref[...], preferred_element_type=jnp.float32)
    h = h + b1_ref[...]
    h = h * jax.nn.sigmoid(h)                                      # SiLU (EUP)
    out = jnp.dot(h, w2_ref[...], preferred_element_type=jnp.float32)
    out = out + b2_ref[...]
    o_ref[...] = out.astype(o_ref.dtype)


# ------------------------------ host wrapper ----------------------------------
def learnable_time_embedding(timesteps, w1, b1, w2, b2, *, max_period=10000):
    """JAX/Pallas equivalent of LearnableTimeEmbedding.forward(timesteps).

    timesteps: (B,)            (any real/int dtype)
    w1: (D, 2D)  b1: (2D,)     first Linear  (stored as in->out, i.e. W.T of torch)
    w2: (2D, D)  b2: (D,)      second Linear
    returns: (B, D) float32
    """
    B = timesteps.shape[0]
    D, H = w1.shape                      # H == 2 * D
    assert w2.shape == (H, D) and b1.shape == (H,) and b2.shape == (D,)

    # ---- lane-dense padding of feature dims (exact: pads are zeros) ----
    Dp = _round_up(D, 128)
    Hp = _round_up(H, 128)

    half = D // 2
    freqs = jnp.exp(
        -math.log(max_period)
        * jnp.arange(half, dtype=jnp.float32) / float(half))
    freq_row = jnp.zeros((1, Dp), jnp.float32)
    freq_row = freq_row.at[0, :half].set(freqs).at[0, half:2 * half].set(freqs)
    # cos on the first `half` columns; sin elsewhere (sin(0)=0 on pad columns,
    # which also reproduces the explicit zero column of the odd-D case).
    cmask_row = jnp.zeros((1, Dp), jnp.float32).at[0, :half].set(1.0)

    f32 = jnp.float32
    w1_p = jnp.zeros((Dp, Hp), f32).at[:D, :H].set(w1.astype(f32))
    b1_p = jnp.zeros((1, Hp), f32).at[0, :H].set(b1.astype(f32))
    w2_p = jnp.zeros((Hp, Dp), f32).at[:H, :D].set(w2.astype(f32))
    b2_p = jnp.zeros((1, Dp), f32).at[0, :D].set(b2.astype(f32))

    # ---- row tiling over the batch of timesteps ----
    Bp8 = _round_up(max(B, 1), 8)
    TM = min(256, Bp8)
    Bp = _round_up(Bp8, TM)
    t2d = jnp.zeros((Bp, 1), f32).at[:B, 0].set(timesteps.astype(f32))

    flops = 4 * Bp * Dp * Hp                       # two (Bp,Dp/Hp)x(...,Hp/Dp) matmuls
    transcendentals = Bp * (Dp + Hp)               # cos/sin + sigmoid
    bytes_accessed = 4 * (Bp * 1 + 2 * Dp + Dp * Hp + Hp + Hp * Dp + Dp
                          + Bp * Dp)

    out_p = pl.pallas_call(
        _time_embed_kernel,
        out_shape=jax.ShapeDtypeStruct((Bp, Dp), jnp.float32),
        grid=(Bp // TM,),
        in_specs=[
            pl.BlockSpec((TM, 1), lambda i: (i, 0)),      # timesteps row tile
            pl.BlockSpec((1, Dp), lambda i: (0, 0)),      # freqs   (resident)
            pl.BlockSpec((1, Dp), lambda i: (0, 0)),      # cos mask(resident)
            pl.BlockSpec((Dp, Hp), lambda i: (0, 0)),     # W1      (resident)
            pl.BlockSpec((1, Hp), lambda i: (0, 0)),      # b1
            pl.BlockSpec((Hp, Dp), lambda i: (0, 0)),     # W2      (resident)
            pl.BlockSpec((1, Dp), lambda i: (0, 0)),      # b2
        ],
        out_specs=pl.BlockSpec((TM, Dp), lambda i: (i, 0)),
        compiler_params=pltpu.CompilerParams(
            dimension_semantics=("parallel",),            # both TCs on v7x
            vmem_limit_bytes=64 * 1024 * 1024,
        ),
        cost_estimate=pl.CostEstimate(
            flops=flops,
            transcendentals=transcendentals,
            bytes_accessed=bytes_accessed,
        ),
    )(t2d, freq_row, cmask_row, w1_p, b1_p, w2_p, b2_p)

    return out_p[:B, :D]


# -------------------------------- reference -----------------------------------
def _reference(timesteps, w1, b1, w2, b2, *, max_period=10000):
    D = w1.shape[0]
    half = D // 2
    freqs = jnp.exp(
        -math.log(max_period)
        * jnp.arange(half, dtype=jnp.float32) / float(half))
    args = timesteps.astype(jnp.float32)[:, None] * freqs[None]
    emb = jnp.concatenate([jnp.cos(args), jnp.sin(args)], axis=-1)
    if D % 2 == 1:
        emb = jnp.concatenate([emb, jnp.zeros_like(emb[:, :1])], axis=-1)
    hp = jax.lax.Precision.HIGHEST
    h = jnp.dot(emb, w1, precision=hp) + b1
    h = jax.nn.silu(h)
    return jnp.dot(h, w2, precision=hp) + b2


# ----------------------------------- main --------------------------------------
if __name__ == "__main__":
    key = jax.random.PRNGKey(0)
    k_t, k_w1, k_b1, k_w2, k_b2 = jax.random.split(key, 5)

    B, D = 8, 32                    # 8 timesteps, embed_dim=32 (hidden = 64)
    H = 2 * D
    timesteps = jax.random.randint(k_t, (B,), 0, 1000).astype(jnp.float32)

    w1 = jax.random.normal(k_w1, (D, H), dtype=jnp.float32) / jnp.sqrt(D)
    b1 = jax.random.normal(k_b1, (H,), dtype=jnp.float32) * 0.01
    w2 = jax.random.normal(k_w2, (H, D), dtype=jnp.float32) / jnp.sqrt(H)
    b2 = jax.random.normal(k_b2, (D,), dtype=jnp.float32) * 0.01

    y = learnable_time_embedding(timesteps, w1, b1, w2, b2, max_period=10000)
    y = jax.block_until_ready(y)
    assert y.shape == (B, D)

    y_ref = _reference(timesteps, w1, b1, w2, b2, max_period=10000)
    assert jnp.allclose(y, y_ref, atol=5e-5, rtol=5e-5), (
        float(jnp.max(jnp.abs(y - y_ref))))

    print("KERNEL_OK")
</pallas_src>

<mosaic_0001>
module attributes {stable_mosaic.version = 11 : i64} {
  func.func @_time_embed_kernel(%arg0: i32, %arg1: memref<8x1xf32, #tpu.memory_space<vmem>>, %arg2: memref<1x128xf32, #tpu.memory_space<vmem>>, %arg3: memref<1x128xf32, #tpu.memory_space<vmem>>, %arg4: memref<128x128xf32, #tpu.memory_space<vmem>>, %arg5: memref<1x128xf32, #tpu.memory_space<vmem>>, %arg6: memref<128x128xf32, #tpu.memory_space<vmem>>, %arg7: memref<1x128xf32, #tpu.memory_space<vmem>>, %arg8: memref<8x128xf32, #tpu.memory_space<vmem>>) attributes {dimension_semantics = [#tpu.dimension_semantics<parallel>], iteration_bounds = array<i64: 1>, scalar_prefetch = 0 : i64, scratch_operands = 0 : i64, tpu.core_type = #tpu.core_type<tc>, window_params = [{transform_indices = @transform_0, window_bounds = array<i64: 8, 1>}, {pipeline_mode = #tpu.pipeline_mode<synchronous>, transform_indices = @transform_1, window_bounds = array<i64: 1, 128>}, {pipeline_mode = #tpu.pipeline_mode<synchronous>, transform_indices = @transform_2, window_bounds = array<i64: 1, 128>}, {pipeline_mode = #tpu.pipeline_mode<synchronous>, transform_indices = @transform_3, window_bounds = array<i64: 128, 128>}, {pipeline_mode = #tpu.pipeline_mode<synchronous>, transform_indices = @transform_4, window_bounds = array<i64: 1, 128>}, {pipeline_mode = #tpu.pipeline_mode<synchronous>, transform_indices = @transform_5, window_bounds = array<i64: 128, 128>}, {pipeline_mode = #tpu.pipeline_mode<synchronous>, transform_indices = @transform_6, window_bounds = array<i64: 1, 128>}, {transform_indices = @transform_7, window_bounds = array<i64: 8, 128>}]} {
    %c0 = arith.constant 0 : index
    %c0_0 = arith.constant 0 : index
    %0 = vector.load %arg1[%c0, %c0_0] : memref<8x1xf32, #tpu.memory_space<vmem>>, vector<8x1xf32>
    %c0_1 = arith.constant 0 : index
    %c0_2 = arith.constant 0 : index
    %1 = vector.load %arg2[%c0_1, %c0_2] : memref<1x128xf32, #tpu.memory_space<vmem>>, vector<1x128xf32>
    %2 = vector.broadcast %0 : vector<8x1xf32> to vector<8x128xf32>
    %3 = vector.broadcast %1 : vector<1x128xf32> to vector<8x128xf32>
    %4 = arith.mulf %2, %3 : vector<8x128xf32>
    %c0_3 = arith.constant 0 : index
    %c0_4 = arith.constant 0 : index
    %5 = vector.load %arg3[%c0_3, %c0_4] : memref<1x128xf32, #tpu.memory_space<vmem>>, vector<1x128xf32>
    %cst = arith.constant 5.000000e-01 : f32
    %6 = vector.broadcast %cst : f32 to vector<1x128xf32>
    %7 = arith.cmpf ogt, %5, %6 : vector<1x128xf32>
    %8 = math.cos %4 : vector<8x128xf32>
    %9 = math.sin %4 : vector<8x128xf32>
    %10 = vector.shape_cast %7 : vector<1x128xi1> to vector<1x128xi1>
    %11 = vector.broadcast %10 : vector<1x128xi1> to vector<8x128xi1>
    %12 = arith.select %11, %8, %9 : vector<8x128xi1>, vector<8x128xf32>
    %c0_5 = arith.constant 0 : index
    %c0_6 = arith.constant 0 : index
    %13 = vector.load %arg4[%c0_5, %c0_6] : memref<128x128xf32, #tpu.memory_space<vmem>>, vector<128x128xf32>
    %cst_7 = arith.constant dense<0.000000e+00> : vector<8x128xf32>
    %14 = tpu.matmul %12, %13, %cst_7 {dimension_numbers = #tpu.dot_dimension_numbers<[1], [0], [0], [1], [0, 0, 1, 1], [], []>} : vector<8x128xf32>, vector<128x128xf32>, vector<8x128xf32> -> vector<8x128xf32>
    %c0_8 = arith.constant 0 : index
    %c0_9 = arith.constant 0 : index
    %15 = vector.load %arg5[%c0_8, %c0_9] : memref<1x128xf32, #tpu.memory_space<vmem>>, vector<1x128xf32>
    %16 = vector.broadcast %15 : vector<1x128xf32> to vector<8x128xf32>
    %17 = arith.addf %14, %16 : vector<8x128xf32>
    %18 = arith.negf %17 : vector<8x128xf32>
    %19 = math.exp %18 : vector<8x128xf32>
    %cst_10 = arith.constant 1.000000e+00 : f32
    %20 = vector.broadcast %cst_10 : f32 to vector<8x128xf32>
    %21 = arith.addf %20, %19 : vector<8x128xf32>
    %22 = arith.divf %20, %21 : vector<8x128xf32>
    %23 = arith.mulf %17, %22 : vector<8x128xf32>
    %c0_11 = arith.constant 0 : index
    %c0_12 = arith.constant 0 : index
    %24 = vector.load %arg6[%c0_11, %c0_12] : memref<128x128xf32, #tpu.memory_space<vmem>>, vector<128x128xf32>
    %cst_13 = arith.constant dense<0.000000e+00> : vector<8x128xf32>
    %25 = tpu.matmul %23, %24, %cst_13 {dimension_numbers = #tpu.dot_dimension_numbers<[1], [0], [0], [1], [0, 0, 1, 1], [], []>} : vector<8x128xf32>, vector<128x128xf32>, vector<8x128xf32> -> vector<8x128xf32>
    %c0_14 = arith.constant 0 : index
    %c0_15 = arith.constant 0 : index
    %26 = vector.load %arg7[%c0_14, %c0_15] : memref<1x128xf32, #tpu.memory_space<vmem>>, vector<1x128xf32>
    %27 = vector.broadcast %26 : vector<1x128xf32> to vector<8x128xf32>
    %28 = arith.addf %25, %27 : vector<8x128xf32>
    %c0_16 = arith.constant 0 : index
    %c0_17 = arith.constant 0 : index
    %29 = vector.load %arg8[%c0_16, %c0_17] : memref<8x128xf32, #tpu.memory_space<vmem>>, vector<8x128xf32>
    tpu.vector_store %arg8[%c0_16, %c0_17], %28 {strides = array<i32>} : memref<8x128xf32, #tpu.memory_space<vmem>>, vector<8x128xf32>,
    return
  }
  func.func @transform_0(%arg0: i32) -> (i32, i32) {
    %c0_i32 = arith.constant 0 : i32
    %c0_i32_0 = arith.constant 0 : i32
    return %arg0, %c0_i32 : i32, i32
  }
  func.func @transform_1(%arg0: i32) -> (i32, i32) {
    %c0_i32 = arith.constant 0 : i32
    %c0_i32_0 = arith.constant 0 : i32
    %c0_i32_1 = arith.constant 0 : i32
    return %c0_i32, %c0_i32_0 : i32, i32
  }
  func.func @transform_2(%arg0: i32) -> (i32, i32) {
    %c0_i32 = arith.constant 0 : i32
    %c0_i32_0 = arith.constant 0 : i32
    %c0_i32_1 = arith.constant 0 : i32
    return %c0_i32, %c0_i32_0 : i32, i32
  }
  func.func @transform_3(%arg0: i32) -> (i32, i32) {
    %c0_i32 = arith.constant 0 : i32
    %c0_i32_0 = arith.constant 0 : i32
    %c0_i32_1 = arith.constant 0 : i32
    return %c0_i32, %c0_i32_0 : i32, i32
  }
  func.func @transform_4(%arg0: i32) -> (i32, i32) {
    %c0_i32 = arith.constant 0 : i32
    %c0_i32_0 = arith.constant 0 : i32
    %c0_i32_1 = arith.constant 0 : i32
    return %c0_i32, %c0_i32_0 : i32, i32
  }
  func.func @transform_5(%arg0: i32) -> (i32, i32) {
    %c0_i32 = arith.constant 0 : i32
    %c0_i32_0 = arith.constant 0 : i32
    %c0_i32_1 = arith.constant 0 : i32
    return %c0_i32, %c0_i32_0 : i32, i32
  }
  func.func @transform_6(%arg0: i32) -> (i32, i32) {
    %c0_i32 = arith.constant 0 : i32
    %c0_i32_0 = arith.constant 0 : i32
    %c0_i32_1 = arith.constant 0 : i32
    return %c0_i32, %c0_i32_0 : i32, i32
  }
  func.func @transform_7(%arg0: i32) -> (i32, i32) {
    %c0_i32 = arith.constant 0 : i32
    %c0_i32_0 = arith.constant 0 : i32
    return %arg0, %c0_i32 : i32, i32
  }
}

</mosaic_0001>

<llo_original>
// kernel: tpu_custom_call.1
$region0: #{tpu_custom_call.1}
  #allocation0 [shape = 'u32[]', space=smem, size = 0x4, offset = 0x4, fixed_abs, tag = 'smem constant byte address 0x4 - core index']
  #allocation1 [shape = 'u32[144,128]{1,0:T(1,128)}', space=vmem, size = 0x12000, scoped, tag = 'internal scratch']
  %s0 = inlined_call_operand.vmem [shape: f32[8,1], index: 0, kind: input, shape index: {}]
  %s1 = inlined_call_operand.vmem [shape: f32[1,128], index: 1, kind: input, shape index: {}]
  %s2 = inlined_call_operand.vmem [shape: f32[1,128], index: 2, kind: input, shape index: {}]
  %s3 = inlined_call_operand.hbm [shape: f32[128,128], index: 3, kind: input, shape index: {}]
  %s4 = inlined_call_operand.vmem [shape: f32[1,128], index: 4, kind: input, shape index: {}]
  %s5 = inlined_call_operand.hbm [shape: f32[128,128], index: 5, kind: input, shape index: {}]
  %s6 = inlined_call_operand.vmem [shape: f32[1,128], index: 6, kind: input, shape index: {}]
  %s7 = inlined_call_operand.hbm [shape: f32[8,128], index: 7, kind: output, shape index: {}]
  %s8 = sld [smem:[#allocation0]]
  $region46: #{tpu_custom_call.1} parent=0
    _
  %s10 = ssub.s32 1, %s8
  %s11 = scalar_select 0, %s10, %s8
  $region1: #{tpu_custom_call.1} parent=0
    #allocation2 [shape = 'u8[65536]{0}', space=vmem, size = 0x10000, scoped, tag = 'input window, operand 3, single buffered']
    #allocation3 [shape = 's32[1]{0}', space=sflag, size = 0x4, scoped, tag = 'scoped memory for tpu_custom_call.1']
    #allocation4 [shape = 's32[1]{0}', space=sflag, size = 0x4, scoped, tag = 'scoped memory for tpu_custom_call.1']
    #allocation5 [shape = 'u8[65536]{0}', space=vmem, size = 0x10000, scoped, tag = 'input window, operand 5, single buffered']
    #allocation6 [shape = 's32[1]{0}', space=sflag, size = 0x4, scoped, tag = 'scoped memory for tpu_custom_call.1']
    #allocation7 [shape = 'u8[4096]{0}', space=vmem, size = 0x1000, scoped, tag = 'output window, operand 0, single buffered']
    %12 = vsyncpa [#allocation3], 0
    %13 = vsyncpa [#allocation6], 0
    %14 = vsyncpa [#allocation4], 0
    // Predicated region
    $region2: #{tpu_custom_call.1} parent=1 // pred_check
      _
    $region3: #{tpu_custom_call.1} parent=1 // pred_check_branch
      %16 = sbr.rel (0) target = $region5
    $region4: #{tpu_custom_call.1} parent=1 // pred_region
      _
    $region5: #{tpu_custom_call.1} parent=1 // pred_fallthru
      _
    // Predicated region
    $region6: #{tpu_custom_call.1} parent=1 // pred_check
      _
    $region7: #{tpu_custom_call.1} parent=1 // pred_check_branch
      %18 = sbr.rel (0) target = $region9
    $region8: #{tpu_custom_call.1} parent=1 // pred_region
      _
    $region9: #{tpu_custom_call.1} parent=1 // pred_fallthru
      _
    // Predicated region
    $region10: #{tpu_custom_call.1} parent=1 // pred_check
      _
    $region11: #{tpu_custom_call.1} parent=1 // pred_check_branch
      %20 = sbr.rel (0) target = $region13
    $region12: #{tpu_custom_call.1} parent=1 // pred_region
      _
    $region13: #{tpu_custom_call.1} parent=1 // pred_fallthru
      _
    // Predicated region
    $region14: #{tpu_custom_call.1} parent=1 // pred_check
      _
    $region15: #{tpu_custom_call.1} parent=1 // pred_check_branch
      %22 = sbr.rel (0) target = $region17
    $region16: #{tpu_custom_call.1} parent=1 // pred_region
      %s24 = ssub.s32 2048, 2048
      %25 = vsyncadd [#allocation3], %s24
      %s26 = sshll.u32 [#allocation2], 4
      %s27 = int_to_ptr.vmem [resolvable:$true] %s26
      %32 = dma.hbm_to_vmem [thread:$0]  %s3, 2048, %s27, [#allocation3], 128, 128, 8
    $region17: #{tpu_custom_call.1} parent=1 // pred_fallthru
      _
    // Predicated region
    $region18: #{tpu_custom_call.1} parent=1 // pred_check
      _
    $region19: #{tpu_custom_call.1} parent=1 // pred_check_branch
      %34 = sbr.rel (0) target = $region21
    $region20: #{tpu_custom_call.1} parent=1 // pred_region
      _
    $region21: #{tpu_custom_call.1} parent=1 // pred_fallthru
      _
    // Predicated region
    $region22: #{tpu_custom_call.1} parent=1 // pred_check
      _
    $region23: #{tpu_custom_call.1} parent=1 // pred_check_branch
      %36 = sbr.rel (0) target = $region25
    $region24: #{tpu_custom_call.1} parent=1 // pred_region
      %s38 = ssub.s32 2048, 2048
      %39 = vsyncadd [#allocation6], %s38
      %s40 = sshll.u32 [#allocation5], 4
      %s41 = int_to_ptr.vmem [resolvable:$true] %s40
      %46 = dma.hbm_to_vmem [thread:$0]  %s5, 2048, %s41, [#allocation6], 128, 128, 8
    $region25: #{tpu_custom_call.1} parent=1 // pred_fallthru
      _
    // Predicated region
    $region26: #{tpu_custom_call.1} parent=1 // pred_check
      _
    $region27: #{tpu_custom_call.1} parent=1 // pred_check_branch
      %48 = sbr.rel (0) target = $region29
    $region28: #{tpu_custom_call.1} parent=1 // pred_region
      _
    $region29: #{tpu_custom_call.1} parent=1 // pred_fallthru
      _
    // Predicated region
    $region30: #{tpu_custom_call.1} parent=1 // pred_check
      _
    $region31: #{tpu_custom_call.1} parent=1 // pred_check_branch
      %50 = sbr.rel (0) target = $region33
    $region32: #{tpu_custom_call.1} parent=1 // pred_region
      %51 = dma.done [#allocation3], 2048
    $region33: #{tpu_custom_call.1} parent=1 // pred_fallthru
      _
    // Predicated region
    $region34: #{tpu_custom_call.1} parent=1 // pred_check
      _
    $region35: #{tpu_custom_call.1} parent=1 // pred_check_branch
      %53 = sbr.rel (0) target = $region37
    $region36: #{tpu_custom_call.1} parent=1 // pred_region
      %54 = dma.done [#allocation6], 2048
    $region37: #{tpu_custom_call.1} parent=1 // pred_fallthru
      _
    %v55 = vld [vmem:[%s0] sm:$0xff]
    %v56 = vld [vmem:[%s1] sm:$0x1]
    %58 = vset.pattern.permute.xlu0 0
    %59 = vperm.xlu0 %58, %v55
    %v60 = vpop.permute.xlu0 %59
    %v63 = vlaneseq
    %v64 = vshrl.u32 %v63, 7
    %v65 = vsub.s32 0, %v64
    %v66 = vrot.slane %v56, %v65
    %v68 = vmul.f32 %v60, %v66
    %v69 = vld [vmem:[%s2] sm:$0x1]
    %vm70 = vcmp.gt.f32.partialorder %v69, 0.5
    %v71 = vand.u32 2147483647, %v68
    %vm72 = vcmp.le.f32.partialorder %v71, 0.7853982
    %vm73 = vcmp.lt.s32.totalorder %v68, 0
    %v74 = vand.u32 %v68, 2139095040
    %v75 = vshrl.u32 %v74, 23
    %v76 = vsub.s32 %v75, 127
    %v77 = vand.u32 2147483647, %v68
    %v78 = vand.u32 %v77, 8388607
    %v79 = vor.u32 %v78, 8388608
    %v80 = vsub.s32 0, %v79
    %v81 = vadd.s32 %v76, 1
    %vm82 = vcmp.gt.s32.totalorder %v81, 0
    %v83 = vsel %vm82, %v81, 0
    %v84 = vshrl.u32 %v83, 5
    %v85 = vand.u32 %v83, 31
    %v86 = vsub.s32 32, %v85
    %v87 = vshrl.u32 683565275, %v86
    %v88 = vshll.u32 683565275, %v85
    %v89 = vshrl.u32 2475754826, %v86
    %v90 = vor.u32 %v88, %v89
    %v91 = vshll.u32 2475754826, %v85
    %v92 = vshrl.u32 2131351028, %v86
    %v93 = vor.u32 %v91, %v92
    %v94 = vshll.u32 2131351028, %v85
    %v95 = vshrl.u32 2102212464, %v86
    %v96 = vor.u32 %v94, %v95
    %v97 = vshll.u32 2102212464, %v85
    %v98 = vshrl.u32 920167782, %v86
    %v99 = vor.u32 %v97, %v98
    %v100 = vshll.u32 920167782, %v85
    %v101 = vshrl.u32 1326507024, %v86
    %v102 = vor.u32 %v100, %v101
    %vm103 = vcmp.lt.s32.totalorder %v84, 1
    %vm104 = vcmp.lt.s32.totalorder %v84, 2
    %vm105 = vcmp.lt.s32.totalorder %v84, 3
    %vm106 = vcmp.lt.s32.totalorder %v84, 4
    %v107 = vsel %vm103, %v87, %v90
    %v108 = vsel %vm106, %v96, 2102212464
    %v109 = vsel %vm105, %v93, %v108
    %v110 = vsel %vm104, %v107, %v109
    %v111 = vsel %vm103, %v90, %v93
    %v112 = vsel %vm106, %v99, 920167782
    %v113 = vsel %vm105, %v96, %v112
    %v114 = vsel %vm104, %v111, %v113
    %v115 = vsel %vm103, %v93, %v96
    %v116 = vsel %vm106, %v102, 1326507024
    %v117 = vsel %vm105, %v99, %v116
    %v118 = vsel %vm104, %v115, %v117
    %v119 = vshll.u32 %v79, 8
    %v120 = vmul.u32.u64.compose %v119, %v118
    %v121 = vextract.low.u32 %v120
    %v122 = vextract.high.u32 %v120
    %v123 = vmul.u32.u64.compose %v119, %v114
    %v124 = vextract.low.u32 %v123
    %v125 = vextract.high.u32 %v123
    %v126 = vmul.u32 %v119, %v110
    %v127 = vadd.s32 %v122, %v124
    %vm128 = vc.u32 %v122, %v124
    %v129 = vadd.s32 %v125, 1
    %v130 = vsel %vm128, %v129, %v125
    %v131 = vadd.s32 %v126, %v130
    %v132 = vadd.s32 %v131, 536870912
    %v133 = vshrl.u32 %v132, 30
    %v134 = vshll.u32 %v133, 30
    %v135 = vsub.s32 %v131, %v134
    %vm136 = vcmp.lt.s32.totalorder %v135, 0
    %v137 = vsub.s32 0, %v135
    %v138 = vsel %vm136, %v137, %v135
    %v139 = vclz %v138
    %v140 = vsub.s32 %v139, 2
    %vm141 = vcmp.gt.s32.totalorder 0, %v140
    %v142 = vsel %vm141, 0, %v140
    %v143 = vsub.s32 32, %v142
    %v144 = vshll.u32 %v135, %v142
    %v145 = vshrl.u32 %v127, %v143
    %v146 = vor.u32 %v144, %v145
    %v147 = vsub.s32 4294967266, %v142
    %v148 = vadd.s32 %v147, 127
    %v149 = vshll.u32 %v148, 23
    %v150 = vor.u32 4788187, %v149
    %v151 = vand.u32 2147483647, %v150
    %v153 = vcvt.s32.f32 %v146
    %v154 = vmul.f32 %v153, %v151
    %v155 = vxor.u32 %v154, 2147483648
    %v156 = vsel %vm73, %v155, %v154
    %v157 = vsub.s32 4, %v133
    %v158 = vsel %vm73, %v157, %v133
    %v159 = vsel %vm72, %v68, %v156
    %v160 = vsel %vm72, 0, %v158
    %v161 = vcosq.f32.pop %v159
    %v162 = vsinq.f32.pop %v159
    %vm163 = vweird.f32 %v68
    %v164 = vand.u32 %v160, 3
    %vm165 = vcmp.lt.s32.totalorder %v164, 2
    %vm166 = vcmp.eq.s32.totalorder %v164, 0
    %v167 = vxor.u32 %v162, 2147483648
    %v168 = vsel %vm166, %v161, %v167
    %vm169 = vcmp.eq.s32.totalorder %v164, 2
    %v170 = vxor.u32 %v161, 2147483648
    %v171 = vsel %vm169, %v170, %v162
    %v172 = vsel %vm165, %v168, %v171
    %v173 = vsel %vm163, nan, %v172
    %v174 = vand.u32 2147483647, %v68
    %vm175 = vcmp.le.f32.partialorder %v174, 0.7853982
    %vm176 = vcmp.lt.s32.totalorder %v68, 0
    %v177 = vand.u32 %v68, 2139095040
    %v178 = vshrl.u32 %v177, 23
    %v179 = vsub.s32 %v178, 127
    %v180 = vand.u32 2147483647, %v68
    %v181 = vand.u32 %v180, 8388607
    %v182 = vor.u32 %v181, 8388608
    %v183 = vsub.s32 0, %v182
    %v184 = vadd.s32 %v179, 1
    %vm185 = vcmp.gt.s32.totalorder %v184, 0
    %v186 = vsel %vm185, %v184, 0
    %v187 = vshrl.u32 %v186, 5
    %v188 = vand.u32 %v186, 31
    %v189 = vsub.s32 32, %v188
    %v190 = vshrl.u32 683565275, %v189
    %v191 = vshll.u32 683565275, %v188
    %v192 = vshrl.u32 2475754826, %v189
    %v193 = vor.u32 %v191, %v192
    %v194 = vshll.u32 2475754826, %v188
    %v195 = vshrl.u32 2131351028, %v189
    %v196 = vor.u32 %v194, %v195
    %v197 = vshll.u32 2131351028, %v188
    %v198 = vshrl.u32 2102212464, %v189
    %v199 = vor.u32 %v197, %v198
    %v200 = vshll.u32 2102212464, %v188
    %v201 = vshrl.u32 920167782, %v189
    %v202 = vor.u32 %v200, %v201
    %v203 = vshll.u32 920167782, %v188
    %v204 = vshrl.u32 1326507024, %v189
    %v205 = vor.u32 %v203, %v204
    %vm206 = vcmp.lt.s32.totalorder %v187, 1
    %vm207 = vcmp.lt.s32.totalorder %v187, 2
    %vm208 = vcmp.lt.s32.totalorder %v187, 3
    %vm209 = vcmp.lt.s32.totalorder %v187, 4
    %v210 = vsel %vm206, %v190, %v193
    %v211 = vsel %vm209, %v199, 2102212464
    %v212 = vsel %vm208, %v196, %v211
    %v213 = vsel %vm207, %v210, %v212
    %v214 = vsel %vm206, %v193, %v196
    %v215 = vsel %vm209, %v202, 920167782
    %v216 = vsel %vm208, %v199, %v215
    %v217 = vsel %vm207, %v214, %v216
    %v218 = vsel %vm206, %v196, %v199
    %v219 = vsel %vm209, %v205, 1326507024
    %v220 = vsel %vm208, %v202, %v219
    %v221 = vsel %vm207, %v218, %v220
    %v222 = vshll.u32 %v182, 8
    %v223 = vmul.u32.u64.compose %v222, %v221
    %v224 = vextract.low.u32 %v223
    %v225 = vextract.high.u32 %v223
    %v226 = vmul.u32.u64.compose %v222, %v217
    %v227 = vextract.low.u32 %v226
    %v228 = vextract.high.u32 %v226
    %v229 = vmul.u32 %v222, %v213
    %v230 = vadd.s32 %v225, %v227
    %vm231 = vc.u32 %v225, %v227
    %v232 = vadd.s32 %v228, 1
    %v233 = vsel %vm231, %v232, %v228
    %v234 = vadd.s32 %v229, %v233
    %v235 = vadd.s32 %v234, 536870912
    %v236 = vshrl.u32 %v235, 30
    %v237 = vshll.u32 %v236, 30
    %v238 = vsub.s32 %v234, %v237
    %vm239 = vcmp.lt.s32.totalorder %v238, 0
    %v240 = vsub.s32 0, %v238
    %v241 = vsel %vm239, %v240, %v238
    %v242 = vclz %v241
    %v243 = vsub.s32 %v242, 2
    %vm244 = vcmp.gt.s32.totalorder 0, %v243
    %v245 = vsel %vm244, 0, %v243
    %v246 = vsub.s32 32, %v245
    %v247 = vshll.u32 %v238, %v245
    %v248 = vshrl.u32 %v230, %v246
    %v249 = vor.u32 %v247, %v248
    %v250 = vsub.s32 4294967266, %v245
    %v251 = vadd.s32 %v250, 127
    %v252 = vshll.u32 %v251, 23
    %v253 = vor.u32 4788187, %v252
    %v254 = vand.u32 2147483647, %v253
    %v256 = vcvt.s32.f32 %v249
    %v257 = vmul.f32 %v256, %v254
    %v258 = vxor.u32 %v257, 2147483648
    %v259 = vsel %vm176, %v258, %v257
    %v260 = vsub.s32 4, %v236
    %v261 = vsel %vm176, %v260, %v236
    %v262 = vsel %vm175, %v68, %v259
    %v263 = vsel %vm175, 0, %v261
    %v264 = vcosq.f32.pop %v262
    %v265 = vsinq.f32.pop %v262
    %vm266 = vweird.f32 %v68
    %v267 = vadd.s32 %v263, 3
    %v268 = vand.u32 %v267, 3
    %vm269 = vcmp.lt.s32.totalorder %v268, 2
    %vm270 = vcmp.eq.s32.totalorder %v268, 0
    %v271 = vxor.u32 %v265, 2147483648
    %v272 = vsel %vm270, %v264, %v271
    %vm273 = vcmp.eq.s32.totalorder %v268, 2
    %v274 = vxor.u32 %v264, 2147483648
    %v275 = vsel %vm273, %v274, %v265
    %v276 = vsel %vm269, %v272, %v275
    %v277 = vsel %vm266, nan, %v276
    %v278 = vsel %vm70, 1, 0
    %v279 = vlaneseq
    %v280 = vshrl.u32 %v279, 7
    %v281 = vsub.s32 0, %v280
    %v282 = vrot.slane %v278, %v281
    %vm283 = vcmp.eq.s32.totalorder %v282, 1
    %v284 = vsel %vm283, %v173, %v277
    %v285 = vld [vmem:[#allocation2] sm:$0xff]
    %v286 = vld [vmem:[#allocation2 + $0x8] sm:$0xff]
    %v287 = vld [vmem:[#allocation2 + $0x10] sm:$0xff]
    %v288 = vld [vmem:[#allocation2 + $0x18] sm:$0xff]
    %v289 = vld [vmem:[#allocation2 + $0x20] sm:$0xff]
    %v290 = vld [vmem:[#allocation2 + $0x28] sm:$0xff]
    %v291 = vld [vmem:[#allocation2 + $0x30] sm:$0xff]
    %v292 = vld [vmem:[#allocation2 + $0x38] sm:$0xff]
    %v293 = vld [vmem:[#allocation2 + $0x40] sm:$0xff]
    %v294 = vld [vmem:[#allocation2 + $0x48] sm:$0xff]
    %v295 = vld [vmem:[#allocation2 + $0x50] sm:$0xff]
    %v296 = vld [vmem:[#allocation2 + $0x58] sm:$0xff]
    %v297 = vld [vmem:[#allocation2 + $0x60] sm:$0xff]
    %v298 = vld [vmem:[#allocation2 + $0x68] sm:$0xff]
    %v299 = vld [vmem:[#allocation2 + $0x70] sm:$0xff]
    %v300 = vld [vmem:[#allocation2 + $0x78] sm:$0xff]
    %v301 = vld [vmem:[%s4] sm:$0x1]
    %v303 = vlaneseq
    %v304 = vshrl.u32 %v303, 7
    %v305 = vsub.s32 0, %v304
    %v306 = vrot.slane %v301, %v305
    %308 = vmatprep.subr.mxu0 0.0
    %309 = vmatpush1.msra.mxu0 %v300
    %310 = vmatprep.subr.mxu0 0.0
    %311 = vmatpush1.msra.mxu0 %v299
    %312 = vmatprep.subr.mxu0 0.0
    %313 = vmatpush1.msra.mxu0 %v298
    %314 = vmatprep.subr.mxu0 0.0
    %315 = vmatpush1.msra.mxu0 %v297
    %316 = vmatprep.subr.mxu0 0.0
    %317 = vmatpush1.msra.mxu0 %v296
    %318 = vmatprep.subr.mxu0 0.0
    %319 = vmatpush1.msra.mxu0 %v295
    %320 = vmatprep.subr.mxu0 0.0
    %321 = vmatpush1.msra.mxu0 %v294
    %322 = vmatprep.subr.mxu0 0.0
    %323 = vmatpush1.msra.mxu0 %v293
    %324 = vmatprep.subr.mxu0 0.0
    %325 = vmatpush1.msra.mxu0 %v292
    %326 = vmatprep.subr.mxu0 0.0
    %327 = vmatpush1.msra.mxu0 %v291
    %328 = vmatprep.subr.mxu0 0.0
    %329 = vmatpush1.msra.mxu0 %v290
    %330 = vmatprep.subr.mxu0 0.0
    %331 = vmatpush1.msra.mxu0 %v289
    %332 = vmatprep.subr.mxu0 0.0
    %333 = vmatpush1.msra.mxu0 %v288
    %334 = vmatprep.subr.mxu0 0.0
    %335 = vmatpush1.msra.mxu0 %v287
    %336 = vmatprep.subr.mxu0 0.0
    %337 = vmatpush1.msra.mxu0 %v286
    %338 = vmatprep.subr.mxu0 0.0
    %339 = vmatpush1.msra.mxu0 %v285
    %340 = vmatprep.subr.mxu0 0.0
    %341 = vmatpush2.msra.mxu0 0.0
    %342 = vmatprep.subr.mxu0 0.0
    %343 = vmatpush2.msra.mxu0 0.0
    %344 = vmatprep.subr.mxu0 0.0
    %345 = vmatpush2.msra.mxu0 0.0
    %346 = vmatprep.subr.mxu0 0.0
    %347 = vmatpush2.msra.mxu0 0.0
    %348 = vmatprep.subr.mxu0 0.0
    %349 = vmatpush2.msra.mxu0 0.0
    %350 = vmatprep.subr.mxu0 0.0
    %351 = vmatpush2.msra.mxu0 0.0
    %352 = vmatprep.subr.mxu0 0.0
    %353 = vmatpush2.msra.mxu0 0.0
    %354 = vmatprep.subr.mxu0 0.0
    %355 = vmatpush2.msra.mxu0 0.0
    %356 = vmatprep.subr.mxu0 0.0
    %357 = vmatpush2.msra.mxu0 0.0
    %358 = vmatprep.subr.mxu0 0.0
    %359 = vmatpush2.msra.mxu0 0.0
    %360 = vmatprep.subr.mxu0 0.0
    %361 = vmatpush2.msra.mxu0 0.0
    %362 = vmatprep.subr.mxu0 0.0
    %363 = vmatpush2.msra.mxu0 0.0
    %364 = vmatprep.subr.mxu0 0.0
    %365 = vmatpush2.msra.mxu0 0.0
    %366 = vmatprep.subr.mxu0 0.0
    %367 = vmatpush2.msra.mxu0 0.0
    %368 = vmatprep.subr.mxu0 0.0
    %369 = vmatpush2.msra.mxu0 0.0
    %370 = vmatprep.subr.mxu0 0.0
    %371 = vmatpush2.msra.mxu0 0.0
    %372 = vmatprep.mubr.f32.mxu0 0.0
    %373 = vmatmul.mubr.f32.gmra.mxu0 %v284
    %v374 = vpop.f32.mrf.mxu0
    %v375 = vadd.f32 %v306, %v374
    %v376 = vpop.f32.mrf.mxu0
    %377 = vdwg.mxu0
    %v378 = vxor.u32 %v375, 2147483648
    %v379 = vmul.f32 %v378, 1.442695
    %v380 = vpow.pop %v379
    %v381 = vadd.f32 %v380, 1.0
    %v382 = vrcp.pop %v381
    %v383 = vmul.f32 1.0, %v382
    %v384 = vmul.f32 %v375, %v383
    %v385 = vld [vmem:[#allocation5] sm:$0xff]
    %v386 = vld [vmem:[#allocation5 + $0x8] sm:$0xff]
    %v387 = vld [vmem:[#allocation5 + $0x10] sm:$0xff]
    %v388 = vld [vmem:[#allocation5 + $0x18] sm:$0xff]
    %v389 = vld [vmem:[#allocation5 + $0x20] sm:$0xff]
    %v390 = vld [vmem:[#allocation5 + $0x28] sm:$0xff]
    %v391 = vld [vmem:[#allocation5 + $0x30] sm:$0xff]
    %v392 = vld [vmem:[#allocation5 + $0x38] sm:$0xff]
    %v393 = vld [vmem:[#allocation5 + $0x40] sm:$0xff]
    %v394 = vld [vmem:[#allocation5 + $0x48] sm:$0xff]
    %v395 = vld [vmem:[#allocation5 + $0x50] sm:$0xff]
    %v396 = vld [vmem:[#allocation5 + $0x58] sm:$0xff]
    %v397 = vld [vmem:[#allocation5 + $0x60] sm:$0xff]
    %v398 = vld [vmem:[#allocation5 + $0x68] sm:$0xff]
    %v399 = vld [vmem:[#allocation5 + $0x70] sm:$0xff]
    %v400 = vld [vmem:[#allocation5 + $0x78] sm:$0xff]
    %v401 = vld [vmem:[%s6] sm:$0x1]
    %v403 = vlaneseq
    %v404 = vshrl.u32 %v403, 7
    %v405 = vsub.s32 0, %v404
    %v406 = vrot.slane %v401, %v405
    %408 = vmatprep.subr.mxu0 0.0
    %409 = vmatpush1.msra.mxu0 %v400
    %410 = vmatprep.subr.mxu0 0.0
    %411 = vmatpush1.msra.mxu0 %v399
    %412 = vmatprep.subr.mxu0 0.0
    %413 = vmatpush1.msra.mxu0 %v398
    %414 = vmatprep.subr.mxu0 0.0
    %415 = vmatpush1.msra.mxu0 %v397
    %416 = vmatprep.subr.mxu0 0.0
    %417 = vmatpush1.msra.mxu0 %v396
    %418 = vmatprep.subr.mxu0 0.0
    %419 = vmatpush1.msra.mxu0 %v395
    %420 = vmatprep.subr.mxu0 0.0
    %421 = vmatpush1.msra.mxu0 %v394
    %422 = vmatprep.subr.mxu0 0.0
    %423 = vmatpush1.msra.mxu0 %v393
    %424 = vmatprep.subr.mxu0 0.0
    %425 = vmatpush1.msra.mxu0 %v392
    %426 = vmatprep.subr.mxu0 0.0
    %427 = vmatpush1.msra.mxu0 %v391
    %428 = vmatprep.subr.mxu0 0.0
    %429 = vmatpush1.msra.mxu0 %v390
    %430 = vmatprep.subr.mxu0 0.0
    %431 = vmatpush1.msra.mxu0 %v389
    %432 = vmatprep.subr.mxu0 0.0
    %433 = vmatpush1.msra.mxu0 %v388
    %434 = vmatprep.subr.mxu0 0.0
    %435 = vmatpush1.msra.mxu0 %v387
    %436 = vmatprep.subr.mxu0 0.0
    %437 = vmatpush1.msra.mxu0 %v386
    %438 = vmatprep.subr.mxu0 0.0
    %439 = vmatpush1.msra.mxu0 %v385
    %440 = vmatprep.subr.mxu0 0.0
    %441 = vmatpush2.msra.mxu0 0.0
    %442 = vmatprep.subr.mxu0 0.0
    %443 = vmatpush2.msra.mxu0 0.0
    %444 = vmatprep.subr.mxu0 0.0
    %445 = vmatpush2.msra.mxu0 0.0
    %446 = vmatprep.subr.mxu0 0.0
    %447 = vmatpush2.msra.mxu0 0.0
    %448 = vmatprep.subr.mxu0 0.0
    %449 = vmatpush2.msra.mxu0 0.0
    %450 = vmatprep.subr.mxu0 0.0
    %451 = vmatpush2.msra.mxu0 0.0
    %452 = vmatprep.subr.mxu0 0.0
    %453 = vmatpush2.msra.mxu0 0.0
    %454 = vmatprep.subr.mxu0 0.0
    %455 = vmatpush2.msra.mxu0 0.0
    %456 = vmatprep.subr.mxu0 0.0
    %457 = vmatpush2.msra.mxu0 0.0
    %458 = vmatprep.subr.mxu0 0.0
    %459 = vmatpush2.msra.mxu0 0.0
    %460 = vmatprep.subr.mxu0 0.0
    %461 = vmatpush2.msra.mxu0 0.0
    %462 = vmatprep.subr.mxu0 0.0
    %463 = vmatpush2.msra.mxu0 0.0
    %464 = vmatprep.subr.mxu0 0.0
    %465 = vmatpush2.msra.mxu0 0.0
    %466 = vmatprep.subr.mxu0 0.0
    %467 = vmatpush2.msra.mxu0 0.0
    %468 = vmatprep.subr.mxu0 0.0
    %469 = vmatpush2.msra.mxu0 0.0
    %470 = vmatprep.subr.mxu0 0.0
    %471 = vmatpush2.msra.mxu0 0.0
    %472 = vmatprep.mubr.f32.mxu0 0.0
    %473 = vmatmul.mubr.f32.gmra.mxu0 %v384
    %v474 = vpop.f32.mrf.mxu0
    %v475 = vadd.f32 %v406, %v474
    %v476 = vpop.f32.mrf.mxu0
    %477 = vdwg.mxu0
    %478 = vst [vmem:[#allocation7] sm:$0xff] %v475
    // Predicated region
    $region38: #{tpu_custom_call.1} parent=1 // pred_check
      _
    $region39: #{tpu_custom_call.1} parent=1 // pred_check_branch
      %480 = sbr.rel (0) target = $region41
    $region40: #{tpu_custom_call.1} parent=1 // pred_region
      %s482 = ssub.s32 128, 128
      %483 = vsyncadd [#allocation4], %s482
      %s485 = sshll.u32 [#allocation7], 4
      %s486 = int_to_ptr.vmem [resolvable:$true] %s485
      %488 = dma.vmem_to_hbm [thread:$0]  %s486, 128, %s7, [#allocation4]
    $region41: #{tpu_custom_call.1} parent=1 // pred_fallthru
      _
    // Predicated region
    $region42: #{tpu_custom_call.1} parent=1 // pred_check
      _
    $region43: #{tpu_custom_call.1} parent=1 // pred_check_branch
      %490 = sbr.rel (0) target = $region45
    $region44: #{tpu_custom_call.1} parent=1 // pred_region
      %491 = dma.done [#allocation4], 128
    $region45: #{tpu_custom_call.1} parent=1 // pred_fallthru
      _
    %492 = vsyncpa [#allocation3], 1
    %493 = vsyncpa [#allocation6], 1
    %494 = vsyncpa [#allocation4], 1

</llo_original>
